<compile_context>
chip_gen: v7x
topology: tpu7x:2x2x1
jax: 0.10.0
libtpu: 0.0.40
codegen_flags: <defaults>
</compile_context>

<pallas_src>
import jax
import jax.numpy as jnp
from jax.experimental import pallas as pl
from jax.experimental.pallas import tpu as pltpu


def _tensor_fusion_kernel(x_ref, out_ref, lvl1_ref, *scratch_refs):
    """x_ref: (bt, mn, fd) VMEM block of the raw input.

    out_ref:  (bt, (fd+1)**mn) lane-dense output block.
    lvl1_ref: (bt, fd+1) scratch holding the augmented last modality [1, x_last].
    scratch_refs[lvl-2]: (bt, (fd+1)**lvl) for lvl = 2..mn-1 (intermediate folds).

    Folding order: start from the last modality and fold earlier ones in, so the
    flat column index is i0*(fd+1)^(mn-1) + ... + i_{mn-1}, i.e. exactly the
    row-major flatten (`.view(bs, -1)`) of the PyTorch bmm chain.
    """
    bt, mn, fd = x_ref.shape
    fdp1 = fd + 1
    dtype = out_ref.dtype

    # Level 1: augmented last modality a_{mn-1} = [1, x[:, mn-1, :]].
    lvl1_ref[:, 0:1] = jnp.ones((bt, 1), dtype=dtype)
    lvl1_ref[:, 1:fdp1] = x_ref[:, mn - 1, :]
    prev = lvl1_ref[...]
    width = fdp1

    # Levels 2..mn: fold modality k = mn - lvl into `prev`.
    # Intermediate levels land in VMEM scratch; the final level writes straight
    # into the lane-dense output block.
    for lvl in range(2, mn + 1):
        k = mn - lvl                               # modality folded at this level
        dst = out_ref if lvl == mn else scratch_refs[lvl - 2]
        # j == 0 is the augmentation "1" column -> plain copy (skip the multiply).
        dst[:, 0:width] = prev
        for j in range(1, fdp1):                   # static unroll (fdp1 is small)
            col = x_ref[:, k, j - 1:j]             # (bt, 1) -> lane-broadcast below
            dst[:, j * width:(j + 1) * width] = col * prev
        if lvl < mn:
            prev = dst[...]
            width *= fdp1


def _choose_batch_tile(bs, row_bytes, target_bytes):
    """Pick a batch tile: full batch if it fits, else a multiple of 8 rows
    (sublane-aligned) whose output block stays near target_bytes, keeping the
    double-buffered blocks inside the default scoped VMEM on v5e/v6e/v7x."""
    if bs * row_bytes <= target_bytes:
        return bs
    rows = max(8, ((target_bytes // row_bytes) // 8) * 8)
    return int(min(rows, bs))


def tensor_fusion_head(x, *, target_block_bytes=4 * 1024 * 1024):
    """Pallas implementation of TensorFusionHead.forward.

    x: (bs, mn, fd), mn >= 2.
    returns: (bs, (fd+1)**mn), same dtype as x.
    """
    bs, mn, fd = x.shape
    assert mn >= 2, "TensorFusionHead requires at least 2 modalities"
    fdp1 = fd + 1
    flat = fdp1 ** mn

    row_bytes = flat * x.dtype.itemsize
    bt = _choose_batch_tile(bs, row_bytes, target_block_bytes)
    nb = pl.cdiv(bs, bt)

    # Level-1 scratch plus one scratch per intermediate fold level (empty for mn==2).
    scratch = [pltpu.VMEM((bt, fdp1), x.dtype)]
    scratch += [pltpu.VMEM((bt, fdp1 ** lvl), x.dtype) for lvl in range(2, mn)]

    out = pl.pallas_call(
        _tensor_fusion_kernel,
        out_shape=jax.ShapeDtypeStruct((bs, flat), x.dtype),
        grid=(nb,),
        in_specs=[pl.BlockSpec((bt, mn, fd), lambda b: (b, 0, 0))],
        out_specs=pl.BlockSpec((bt, flat), lambda b: (b, 0)),
        scratch_shapes=scratch,
        compiler_params=pltpu.CompilerParams(
            dimension_semantics=("parallel",)),  # batch tiles are independent
    )(x)
    return out


def _reference(x):
    """Pure-JAX reference mirroring the PyTorch bmm loop."""
    bs, mn, fd = x.shape
    ones = jnp.ones((bs, 1), dtype=x.dtype)
    augs = [jnp.concatenate([ones, x[:, i, :]], axis=1) for i in range(mn)]
    ref = jnp.einsum("bi,bj->bij", augs[0], augs[1]).reshape(bs, -1)
    for i in range(2, mn):
        ref = jnp.einsum("bi,bj->bij", ref, augs[i]).reshape(bs, -1)
    return ref


if __name__ == "__main__":
    key = jax.random.PRNGKey(0)

    # Small shapes consistent with the module's (bs, mn, fd) input.
    bs, mn, fd = 2, 3, 8
    x = jax.random.normal(key, (bs, mn, fd), dtype=jnp.float32)
    out = jax.block_until_ready(tensor_fusion_head(x))
    ref = _reference(x)
    assert out.shape == (bs, (fd + 1) ** mn), out.shape
    assert jnp.allclose(out, ref, atol=1e-5, rtol=1e-5), float(jnp.max(jnp.abs(out - ref)))

    # Exercise the batch-tiled grid (bt=8 -> 2 grid steps).
    bs2, mn2, fd2 = 16, 3, 8
    x2 = jax.random.normal(jax.random.PRNGKey(0), (bs2, mn2, fd2), dtype=jnp.float32)
    out2 = jax.block_until_ready(tensor_fusion_head(x2, target_block_bytes=32 * 1024))
    ref2 = _reference(x2)
    assert out2.shape == (bs2, (fd2 + 1) ** mn2), out2.shape
    assert jnp.allclose(out2, ref2, atol=1e-5, rtol=1e-5), float(jnp.max(jnp.abs(out2 - ref2)))

    # Exercise the mn == 2 (no intermediate scratch) path.
    bs3, mn3, fd3 = 4, 2, 12
    x3 = jax.random.normal(jax.random.PRNGKey(0), (bs3, mn3, fd3), dtype=jnp.float32)
    out3 = jax.block_until_ready(tensor_fusion_head(x3))
    ref3 = _reference(x3)
    assert out3.shape == (bs3, (fd3 + 1) ** mn3), out3.shape
    assert jnp.allclose(out3, ref3, atol=1e-5, rtol=1e-5), float(jnp.max(jnp.abs(out3 - ref3)))

    # Exercise multiple intermediate fold levels (mn == 4).
    bs4, mn4, fd4 = 2, 4, 4
    x4 = jax.random.normal(jax.random.PRNGKey(0), (bs4, mn4, fd4), dtype=jnp.float32)
    out4 = jax.block_until_ready(tensor_fusion_head(x4))
    ref4 = _reference(x4)
    assert out4.shape == (bs4, (fd4 + 1) ** mn4), out4.shape
    assert jnp.allclose(out4, ref4, atol=1e-5, rtol=1e-5), float(jnp.max(jnp.abs(out4 - ref4)))

    # TODO(synk): the PyTorch .cuda() / try-except device fallback is host-side
    # device-placement boilerplate with no Pallas equivalent (JAX handles placement).
    print("KERNEL_OK")
</pallas_src>

<mosaic_0001>
module attributes {stable_mosaic.version = 11 : i64} {
  func.func @_tensor_fusion_kernel(%arg0: i32, %arg1: memref<2x3x8xf32, #tpu.memory_space<vmem>>, %arg2: memref<2x729xf32, #tpu.memory_space<vmem>>, %arg3: memref<2x9xf32, #tpu.memory_space<vmem>>, %arg4: memref<2x81xf32, #tpu.memory_space<vmem>>) attributes {dimension_semantics = [#tpu.dimension_semantics<parallel>], iteration_bounds = array<i64: 1>, scalar_prefetch = 0 : i64, scratch_operands = 2 : i64, tpu.core_type = #tpu.core_type<tc>, window_params = [{transform_indices = @transform_0, window_bounds = array<i64: 2, 3, 8>}, {transform_indices = @transform_1, window_bounds = array<i64: 2, 729>}]} {
    %cst = arith.constant 1.000000e+00 : f32
    %0 = vector.broadcast %cst : f32 to vector<2x1xf32>
    %c0 = arith.constant 0 : index
    %c0_0 = arith.constant 0 : index
    %1 = vector.load %arg3[%c0, %c0_0] : memref<2x9xf32, #tpu.memory_space<vmem>>, vector<2x1xf32>
    tpu.vector_store %arg3[%c0, %c0_0], %0 {strides = array<i32>} : memref<2x9xf32, #tpu.memory_space<vmem>>, vector<2x1xf32>,
    %c0_1 = arith.constant 0 : index
    %c2 = arith.constant 2 : index
    %c0_2 = arith.constant 0 : index
    %2 = vector.load %arg1[%c0_1, %c2, %c0_2] : memref<2x3x8xf32, #tpu.memory_space<vmem>>, vector<2x1x8xf32>
    %3 = vector.shape_cast %2 : vector<2x1x8xf32> to vector<2x8xf32>
    %c0_3 = arith.constant 0 : index
    %c1 = arith.constant 1 : index
    %4 = vector.load %arg3[%c0_3, %c1] : memref<2x9xf32, #tpu.memory_space<vmem>>, vector<2x8xf32>
    tpu.vector_store %arg3[%c0_3, %c1], %3 {strides = array<i32>} : memref<2x9xf32, #tpu.memory_space<vmem>>, vector<2x8xf32>,
    %c0_4 = arith.constant 0 : index
    %c0_5 = arith.constant 0 : index
    %5 = vector.load %arg3[%c0_4, %c0_5] : memref<2x9xf32, #tpu.memory_space<vmem>>, vector<2x9xf32>
    %c0_6 = arith.constant 0 : index
    %c0_7 = arith.constant 0 : index
    %6 = vector.load %arg4[%c0_6, %c0_7] : memref<2x81xf32, #tpu.memory_space<vmem>>, vector<2x9xf32>
    tpu.vector_store %arg4[%c0_6, %c0_7], %5 {strides = array<i32>} : memref<2x81xf32, #tpu.memory_space<vmem>>, vector<2x9xf32>,
    %c0_8 = arith.constant 0 : index
    %c1_9 = arith.constant 1 : index
    %c0_10 = arith.constant 0 : index
    %7 = vector.load %arg1[%c0_8, %c1_9, %c0_10] : memref<2x3x8xf32, #tpu.memory_space<vmem>>, vector<2x1x1xf32>
    %8 = vector.shape_cast %7 : vector<2x1x1xf32> to vector<2x1xf32>
    %9 = vector.broadcast %8 : vector<2x1xf32> to vector<2x9xf32>
    %10 = arith.mulf %9, %5 : vector<2x9xf32>
    %c0_11 = arith.constant 0 : index
    %c9 = arith.constant 9 : index
    %11 = vector.load %arg4[%c0_11, %c9] : memref<2x81xf32, #tpu.memory_space<vmem>>, vector<2x9xf32>
    tpu.vector_store %arg4[%c0_11, %c9], %10 {strides = array<i32>} : memref<2x81xf32, #tpu.memory_space<vmem>>, vector<2x9xf32>,
    %c0_12 = arith.constant 0 : index
    %c1_13 = arith.constant 1 : index
    %c1_14 = arith.constant 1 : index
    %12 = vector.load %arg1[%c0_12, %c1_13, %c1_14] : memref<2x3x8xf32, #tpu.memory_space<vmem>>, vector<2x1x1xf32>
    %13 = vector.shape_cast %12 : vector<2x1x1xf32> to vector<2x1xf32>
    %14 = vector.broadcast %13 : vector<2x1xf32> to vector<2x9xf32>
    %15 = arith.mulf %14, %5 : vector<2x9xf32>
    %c0_15 = arith.constant 0 : index
    %c18 = arith.constant 18 : index
    %16 = vector.load %arg4[%c0_15, %c18] : memref<2x81xf32, #tpu.memory_space<vmem>>, vector<2x9xf32>
    tpu.vector_store %arg4[%c0_15, %c18], %15 {strides = array<i32>} : memref<2x81xf32, #tpu.memory_space<vmem>>, vector<2x9xf32>,
    %c0_16 = arith.constant 0 : index
    %c1_17 = arith.constant 1 : index
    %c2_18 = arith.constant 2 : index
    %17 = vector.load %arg1[%c0_16, %c1_17, %c2_18] : memref<2x3x8xf32, #tpu.memory_space<vmem>>, vector<2x1x1xf32>
    %18 = vector.shape_cast %17 : vector<2x1x1xf32> to vector<2x1xf32>
    %19 = vector.broadcast %18 : vector<2x1xf32> to vector<2x9xf32>
    %20 = arith.mulf %19, %5 : vector<2x9xf32>
    %c0_19 = arith.constant 0 : index
    %c27 = arith.constant 27 : index
    %21 = vector.load %arg4[%c0_19, %c27] : memref<2x81xf32, #tpu.memory_space<vmem>>, vector<2x9xf32>
    tpu.vector_store %arg4[%c0_19, %c27], %20 {strides = array<i32>} : memref<2x81xf32, #tpu.memory_space<vmem>>, vector<2x9xf32>,
    %c0_20 = arith.constant 0 : index
    %c1_21 = arith.constant 1 : index
    %c3 = arith.constant 3 : index
    %22 = vector.load %arg1[%c0_20, %c1_21, %c3] : memref<2x3x8xf32, #tpu.memory_space<vmem>>, vector<2x1x1xf32>
    %23 = vector.shape_cast %22 : vector<2x1x1xf32> to vector<2x1xf32>
    %24 = vector.broadcast %23 : vector<2x1xf32> to vector<2x9xf32>
    %25 = arith.mulf %24, %5 : vector<2x9xf32>
    %c0_22 = arith.constant 0 : index
    %c36 = arith.constant 36 : index
    %26 = vector.load %arg4[%c0_22, %c36] : memref<2x81xf32, #tpu.memory_space<vmem>>, vector<2x9xf32>
    tpu.vector_store %arg4[%c0_22, %c36], %25 {strides = array<i32>} : memref<2x81xf32, #tpu.memory_space<vmem>>, vector<2x9xf32>,
    %c0_23 = arith.constant 0 : index
    %c1_24 = arith.constant 1 : index
    %c4 = arith.constant 4 : index
    %27 = vector.load %arg1[%c0_23, %c1_24, %c4] : memref<2x3x8xf32, #tpu.memory_space<vmem>>, vector<2x1x1xf32>
    %28 = vector.shape_cast %27 : vector<2x1x1xf32> to vector<2x1xf32>
    %29 = vector.broadcast %28 : vector<2x1xf32> to vector<2x9xf32>
    %30 = arith.mulf %29, %5 : vector<2x9xf32>
    %c0_25 = arith.constant 0 : index
    %c45 = arith.constant 45 : index
    %31 = vector.load %arg4[%c0_25, %c45] : memref<2x81xf32, #tpu.memory_space<vmem>>, vector<2x9xf32>
    tpu.vector_store %arg4[%c0_25, %c45], %30 {strides = array<i32>} : memref<2x81xf32, #tpu.memory_space<vmem>>, vector<2x9xf32>,
    %c0_26 = arith.constant 0 : index
    %c1_27 = arith.constant 1 : index
    %c5 = arith.constant 5 : index
    %32 = vector.load %arg1[%c0_26, %c1_27, %c5] : memref<2x3x8xf32, #tpu.memory_space<vmem>>, vector<2x1x1xf32>
    %33 = vector.shape_cast %32 : vector<2x1x1xf32> to vector<2x1xf32>
    %34 = vector.broadcast %33 : vector<2x1xf32> to vector<2x9xf32>
    %35 = arith.mulf %34, %5 : vector<2x9xf32>
    %c0_28 = arith.constant 0 : index
    %c54 = arith.constant 54 : index
    %36 = vector.load %arg4[%c0_28, %c54] : memref<2x81xf32, #tpu.memory_space<vmem>>, vector<2x9xf32>
    tpu.vector_store %arg4[%c0_28, %c54], %35 {strides = array<i32>} : memref<2x81xf32, #tpu.memory_space<vmem>>, vector<2x9xf32>,
    %c0_29 = arith.constant 0 : index
    %c1_30 = arith.constant 1 : index
    %c6 = arith.constant 6 : index
    %37 = vector.load %arg1[%c0_29, %c1_30, %c6] : memref<2x3x8xf32, #tpu.memory_space<vmem>>, vector<2x1x1xf32>
    %38 = vector.shape_cast %37 : vector<2x1x1xf32> to vector<2x1xf32>
    %39 = vector.broadcast %38 : vector<2x1xf32> to vector<2x9xf32>
    %40 = arith.mulf %39, %5 : vector<2x9xf32>
    %c0_31 = arith.constant 0 : index
    %c63 = arith.constant 63 : index
    %41 = vector.load %arg4[%c0_31, %c63] : memref<2x81xf32, #tpu.memory_space<vmem>>, vector<2x9xf32>
    tpu.vector_store %arg4[%c0_31, %c63], %40 {strides = array<i32>} : memref<2x81xf32, #tpu.memory_space<vmem>>, vector<2x9xf32>,
    %c0_32 = arith.constant 0 : index
    %c1_33 = arith.constant 1 : index
    %c7 = arith.constant 7 : index
    %42 = vector.load %arg1[%c0_32, %c1_33, %c7] : memref<2x3x8xf32, #tpu.memory_space<vmem>>, vector<2x1x1xf32>
    %43 = vector.shape_cast %42 : vector<2x1x1xf32> to vector<2x1xf32>
    %44 = vector.broadcast %43 : vector<2x1xf32> to vector<2x9xf32>
    %45 = arith.mulf %44, %5 : vector<2x9xf32>
    %c0_34 = arith.constant 0 : index
    %c72 = arith.constant 72 : index
    %46 = vector.load %arg4[%c0_34, %c72] : memref<2x81xf32, #tpu.memory_space<vmem>>, vector<2x9xf32>
    tpu.vector_store %arg4[%c0_34, %c72], %45 {strides = array<i32>} : memref<2x81xf32, #tpu.memory_space<vmem>>, vector<2x9xf32>,
    %c0_35 = arith.constant 0 : index
    %c0_36 = arith.constant 0 : index
    %47 = vector.load %arg4[%c0_35, %c0_36] : memref<2x81xf32, #tpu.memory_space<vmem>>, vector<2x81xf32>
    %c0_37 = arith.constant 0 : index
    %c0_38 = arith.constant 0 : index
    %48 = vector.load %arg2[%c0_37, %c0_38] : memref<2x729xf32, #tpu.memory_space<vmem>>, vector<2x81xf32>
    tpu.vector_store %arg2[%c0_37, %c0_38], %47 {strides = array<i32>} : memref<2x729xf32, #tpu.memory_space<vmem>>, vector<2x81xf32>,
    %c0_39 = arith.constant 0 : index
    %c0_40 = arith.constant 0 : index
    %c0_41 = arith.constant 0 : index
    %49 = vector.load %arg1[%c0_39, %c0_40, %c0_41] : memref<2x3x8xf32, #tpu.memory_space<vmem>>, vector<2x1x1xf32>
    %50 = vector.shape_cast %49 : vector<2x1x1xf32> to vector<2x1xf32>
    %51 = vector.broadcast %50 : vector<2x1xf32> to vector<2x81xf32>
    %52 = arith.mulf %51, %47 : vector<2x81xf32>
    %c0_42 = arith.constant 0 : index
    %c81 = arith.constant 81 : index
    %53 = vector.load %arg2[%c0_42, %c81] : memref<2x729xf32, #tpu.memory_space<vmem>>, vector<2x81xf32>
    tpu.vector_store %arg2[%c0_42, %c81], %52 {strides = array<i32>} : memref<2x729xf32, #tpu.memory_space<vmem>>, vector<2x81xf32>,
    %c0_43 = arith.constant 0 : index
    %c0_44 = arith.constant 0 : index
    %c1_45 = arith.constant 1 : index
    %54 = vector.load %arg1[%c0_43, %c0_44, %c1_45] : memref<2x3x8xf32, #tpu.memory_space<vmem>>, vector<2x1x1xf32>
    %55 = vector.shape_cast %54 : vector<2x1x1xf32> to vector<2x1xf32>
    %56 = vector.broadcast %55 : vector<2x1xf32> to vector<2x81xf32>
    %57 = arith.mulf %56, %47 : vector<2x81xf32>
    %c0_46 = arith.constant 0 : index
    %c162 = arith.constant 162 : index
    %58 = vector.load %arg2[%c0_46, %c162] : memref<2x729xf32, #tpu.memory_space<vmem>>, vector<2x81xf32>
    tpu.vector_store %arg2[%c0_46, %c162], %57 {strides = array<i32>} : memref<2x729xf32, #tpu.memory_space<vmem>>, vector<2x81xf32>,
    %c0_47 = arith.constant 0 : index
    %c0_48 = arith.constant 0 : index
    %c2_49 = arith.constant 2 : index
    %59 = vector.load %arg1[%c0_47, %c0_48, %c2_49] : memref<2x3x8xf32, #tpu.memory_space<vmem>>, vector<2x1x1xf32>
    %60 = vector.shape_cast %59 : vector<2x1x1xf32> to vector<2x1xf32>
    %61 = vector.broadcast %60 : vector<2x1xf32> to vector<2x81xf32>
    %62 = arith.mulf %61, %47 : vector<2x81xf32>
    %c0_50 = arith.constant 0 : index
    %c243 = arith.constant 243 : index
    %63 = vector.load %arg2[%c0_50, %c243] : memref<2x729xf32, #tpu.memory_space<vmem>>, vector<2x81xf32>
    tpu.vector_store %arg2[%c0_50, %c243], %62 {strides = array<i32>} : memref<2x729xf32, #tpu.memory_space<vmem>>, vector<2x81xf32>,
    %c0_51 = arith.constant 0 : index
    %c0_52 = arith.constant 0 : index
    %c3_53 = arith.constant 3 : index
    %64 = vector.load %arg1[%c0_51, %c0_52, %c3_53] : memref<2x3x8xf32, #tpu.memory_space<vmem>>, vector<2x1x1xf32>
    %65 = vector.shape_cast %64 : vector<2x1x1xf32> to vector<2x1xf32>
    %66 = vector.broadcast %65 : vector<2x1xf32> to vector<2x81xf32>
    %67 = arith.mulf %66, %47 : vector<2x81xf32>
    %c0_54 = arith.constant 0 : index
    %c324 = arith.constant 324 : index
    %68 = vector.load %arg2[%c0_54, %c324] : memref<2x729xf32, #tpu.memory_space<vmem>>, vector<2x81xf32>
    tpu.vector_store %arg2[%c0_54, %c324], %67 {strides = array<i32>} : memref<2x729xf32, #tpu.memory_space<vmem>>, vector<2x81xf32>,
    %c0_55 = arith.constant 0 : index
    %c0_56 = arith.constant 0 : index
    %c4_57 = arith.constant 4 : index
    %69 = vector.load %arg1[%c0_55, %c0_56, %c4_57] : memref<2x3x8xf32, #tpu.memory_space<vmem>>, vector<2x1x1xf32>
    %70 = vector.shape_cast %69 : vector<2x1x1xf32> to vector<2x1xf32>
    %71 = vector.broadcast %70 : vector<2x1xf32> to vector<2x81xf32>
    %72 = arith.mulf %71, %47 : vector<2x81xf32>
    %c0_58 = arith.constant 0 : index
    %c405 = arith.constant 405 : index
    %73 = vector.load %arg2[%c0_58, %c405] : memref<2x729xf32, #tpu.memory_space<vmem>>, vector<2x81xf32>
    tpu.vector_store %arg2[%c0_58, %c405], %72 {strides = array<i32>} : memref<2x729xf32, #tpu.memory_space<vmem>>, vector<2x81xf32>,
    %c0_59 = arith.constant 0 : index
    %c0_60 = arith.constant 0 : index
    %c5_61 = arith.constant 5 : index
    %74 = vector.load %arg1[%c0_59, %c0_60, %c5_61] : memref<2x3x8xf32, #tpu.memory_space<vmem>>, vector<2x1x1xf32>
    %75 = vector.shape_cast %74 : vector<2x1x1xf32> to vector<2x1xf32>
    %76 = vector.broadcast %75 : vector<2x1xf32> to vector<2x81xf32>
    %77 = arith.mulf %76, %47 : vector<2x81xf32>
    %c0_62 = arith.constant 0 : index
    %c486 = arith.constant 486 : index
    %78 = vector.load %arg2[%c0_62, %c486] : memref<2x729xf32, #tpu.memory_space<vmem>>, vector<2x81xf32>
    tpu.vector_store %arg2[%c0_62, %c486], %77 {strides = array<i32>} : memref<2x729xf32, #tpu.memory_space<vmem>>, vector<2x81xf32>,
    %c0_63 = arith.constant 0 : index
    %c0_64 = arith.constant 0 : index
    %c6_65 = arith.constant 6 : index
    %79 = vector.load %arg1[%c0_63, %c0_64, %c6_65] : memref<2x3x8xf32, #tpu.memory_space<vmem>>, vector<2x1x1xf32>
    %80 = vector.shape_cast %79 : vector<2x1x1xf32> to vector<2x1xf32>
    %81 = vector.broadcast %80 : vector<2x1xf32> to vector<2x81xf32>
    %82 = arith.mulf %81, %47 : vector<2x81xf32>
    %c0_66 = arith.constant 0 : index
    %c567 = arith.constant 567 : index
    %83 = vector.load %arg2[%c0_66, %c567] : memref<2x729xf32, #tpu.memory_space<vmem>>, vector<2x81xf32>
    tpu.vector_store %arg2[%c0_66, %c567], %82 {strides = array<i32>} : memref<2x729xf32, #tpu.memory_space<vmem>>, vector<2x81xf32>,
    %c0_67 = arith.constant 0 : index
    %c0_68 = arith.constant 0 : index
    %c7_69 = arith.constant 7 : index
    %84 = vector.load %arg1[%c0_67, %c0_68, %c7_69] : memref<2x3x8xf32, #tpu.memory_space<vmem>>, vector<2x1x1xf32>
    %85 = vector.shape_cast %84 : vector<2x1x1xf32> to vector<2x1xf32>
    %86 = vector.broadcast %85 : vector<2x1xf32> to vector<2x81xf32>
    %87 = arith.mulf %86, %47 : vector<2x81xf32>
    %c0_70 = arith.constant 0 : index
    %c648 = arith.constant 648 : index
    %88 = vector.load %arg2[%c0_70, %c648] : memref<2x729xf32, #tpu.memory_space<vmem>>, vector<2x81xf32>
    tpu.vector_store %arg2[%c0_70, %c648], %87 {strides = array<i32>} : memref<2x729xf32, #tpu.memory_space<vmem>>, vector<2x81xf32>,
    return
  }
  func.func @transform_0(%arg0: i32) -> (i32, i32, i32) {
    %c0_i32 = arith.constant 0 : i32
    %c0_i32_0 = arith.constant 0 : i32
    %c0_i32_1 = arith.constant 0 : i32
    return %arg0, %c0_i32, %c0_i32_0 : i32, i32, i32
  }
  func.func @transform_1(%arg0: i32) -> (i32, i32) {
    %c0_i32 = arith.constant 0 : i32
    %c0_i32_0 = arith.constant 0 : i32
    return %arg0, %c0_i32 : i32, i32
  }
}

</mosaic_0001>

<llo_original>
// kernel: tpu_custom_call.1
$region0: #{tpu_custom_call.1}
  #allocation0 [shape = 'u32[]', space=smem, size = 0x4, offset = 0x4, fixed_abs, tag = 'smem constant byte address 0x4 - core index']
  #allocation1 [shape = 'u32[144,128]{1,0:T(1,128)}', space=vmem, size = 0x12000, scoped, tag = 'internal scratch']
  #allocation2 [shape = 'f32[2,9]{1,0:T(2,128)}', space=vmem, size = 0x400, scoped, tag = 'scratch operand']
  #allocation3 [shape = 'f32[2,81]{1,0:T(2,128)}', space=vmem, size = 0x400, scoped, tag = 'scratch operand']
  %s0 = inlined_call_operand.vmem [shape: f32[2,3,8], index: 0, kind: input, shape index: {}]
  %s1 = inlined_call_operand.hbm [shape: f32[2,729], index: 1, kind: output, shape index: {}]
  %s2 = sld [smem:[#allocation0]]
  $region14: #{tpu_custom_call.1} parent=0
    _
  %s4 = ssub.s32 1, %s2
  %s5 = scalar_select 0, %s4, %s2
  $region1: #{tpu_custom_call.1} parent=0
    #allocation4 [shape = 'u8[6144]{0}', space=vmem, size = 0x1800, scoped, tag = 'output window, operand 0, single buffered']
    #allocation5 [shape = 's32[1]{0}', space=sflag, size = 0x4, scoped, tag = 'scoped memory for tpu_custom_call.1']
    %6 = vsyncpa [#allocation5], 0
    // Predicated region
    $region2: #{tpu_custom_call.1} parent=1 // pred_check
      _
    $region3: #{tpu_custom_call.1} parent=1 // pred_check_branch
      %8 = sbr.rel (0) target = $region5
    $region4: #{tpu_custom_call.1} parent=1 // pred_region
      _
    $region5: #{tpu_custom_call.1} parent=1 // pred_fallthru
      _
    %vm9 = vcmask 1024
    %10 = vst.msk [vmem:[#allocation2] sm:$0x3] %vm9, 1.0
    %v11 = vld [vmem:[%s0 + $0x2] sm:$0x1]
    %v12 = vld [vmem:[%s0 + $0x6] sm:$0x1]
    %v15 = vrot.slane %v12, 7
    %vm16 = vcmask 1041409
    %v17 = vsel %vm16, %v15, %v11
    %18 = vrot.lane.b32.xlu0 %v17, 1
    %v19 = vpop.permute.xlu0 %18
    %vm21 = vcmask 66568
    %22 = vst.msk [vmem:[#allocation2] sm:$0x3] %vm21, %v19
    %v23 = vld [vmem:[#allocation2] sm:$0x3]
    %vm24 = vcmask 66560
    %25 = vst.msk [vmem:[#allocation3] sm:$0x3] %vm24, %v23
    %v26 = vld [vmem:[%s0 + $0x1] sm:$0x1]
    %v27 = vld [vmem:[%s0 + $0x5] sm:$0x1]
    %29 = vset.pattern.permute.xlu0 0
    %30 = vperm.xlu0 %29, %v26
    %v31 = vpop.permute.xlu0 %30
    %34 = vset.pattern.permute.xlu0 0
    %35 = vperm.xlu0 %34, %v27
    %v36 = vpop.permute.xlu0 %35
    %v39 = vrot.slane %v23, 1
    %v42 = vmul.f32 %v31, %v23
    %v43 = vmul.f32 %v36, %v39
    %v46 = vrot.slane %v43, 7
    %v47 = vsel %vm16, %v46, %v42
    %48 = vrot.lane.b32.xlu0 %v47, 9
    %v49 = vpop.permute.xlu0 %48
    %vm51 = vcmask 140360
    %52 = vst.msk [vmem:[#allocation3] sm:$0x3] %vm51, %v49
    %v53 = vld [vmem:[%s0 + $0x1] sm:$0x1]
    %v54 = vld [vmem:[%s0 + $0x5] sm:$0x1]
    %56 = vset.pattern.permute.xlu0 1
    %57 = vperm.xlu0 %56, %v53
    %v58 = vpop.permute.xlu0 %57
    %61 = vset.pattern.permute.xlu0 1
    %62 = vperm.xlu0 %61, %v54
    %v63 = vpop.permute.xlu0 %62
    %v65 = vmul.f32 %v58, %v23
    %v66 = vmul.f32 %v63, %v39
    %v69 = vrot.slane %v66, 7
    %v70 = vsel %vm16, %v69, %v65
    %71 = vrot.lane.b32.xlu0 %v70, 18
    %v72 = vpop.permute.xlu0 %71
    %vm74 = vcmask 214160
    %75 = vst.msk [vmem:[#allocation3] sm:$0x3] %vm74, %v72
    %v76 = vld [vmem:[%s0 + $0x1] sm:$0x1]
    %v77 = vld [vmem:[%s0 + $0x5] sm:$0x1]
    %79 = vset.pattern.permute.xlu0 2
    %80 = vperm.xlu0 %79, %v76
    %v81 = vpop.permute.xlu0 %80
    %84 = vset.pattern.permute.xlu0 2
    %85 = vperm.xlu0 %84, %v77
    %v86 = vpop.permute.xlu0 %85
    %v88 = vmul.f32 %v81, %v23
    %v89 = vmul.f32 %v86, %v39
    %v92 = vrot.slane %v89, 7
    %v93 = vsel %vm16, %v92, %v88
    %94 = vrot.lane.b32.xlu0 %v93, 27
    %v95 = vpop.permute.xlu0 %94
    %vm97 = vcmask 287960
    %98 = vst.msk [vmem:[#allocation3] sm:$0x3] %vm97, %v95
    %v99 = vld [vmem:[%s0 + $0x1] sm:$0x1]
    %v100 = vld [vmem:[%s0 + $0x5] sm:$0x1]
    %102 = vset.pattern.permute.xlu0 3
    %103 = vperm.xlu0 %102, %v99
    %v104 = vpop.permute.xlu0 %103
    %107 = vset.pattern.permute.xlu0 3
    %108 = vperm.xlu0 %107, %v100
    %v109 = vpop.permute.xlu0 %108
    %v111 = vmul.f32 %v104, %v23
    %v112 = vmul.f32 %v109, %v39
    %v115 = vrot.slane %v112, 7
    %v116 = vsel %vm16, %v115, %v111
    %117 = vrot.lane.b32.xlu0 %v116, 36
    %v118 = vpop.permute.xlu0 %117
    %vm120 = vcmask 361760
    %121 = vst.msk [vmem:[#allocation3] sm:$0x3] %vm120, %v118
    %v122 = vld [vmem:[%s0 + $0x1] sm:$0x1]
    %v123 = vld [vmem:[%s0 + $0x5] sm:$0x1]
    %125 = vset.pattern.permute.xlu0 4
    %126 = vperm.xlu0 %125, %v122
    %v127 = vpop.permute.xlu0 %126
    %130 = vset.pattern.permute.xlu0 4
    %131 = vperm.xlu0 %130, %v123
    %v132 = vpop.permute.xlu0 %131
    %v134 = vmul.f32 %v127, %v23
    %v135 = vmul.f32 %v132, %v39
    %v138 = vrot.slane %v135, 7
    %v139 = vsel %vm16, %v138, %v134
    %140 = vrot.lane.b32.xlu0 %v139, 45
    %v141 = vpop.permute.xlu0 %140
    %vm143 = vcmask 435560
    %144 = vst.msk [vmem:[#allocation3] sm:$0x3] %vm143, %v141
    %v145 = vld [vmem:[%s0 + $0x1] sm:$0x1]
    %v146 = vld [vmem:[%s0 + $0x5] sm:$0x1]
    %148 = vset.pattern.permute.xlu0 5
    %149 = vperm.xlu0 %148, %v145
    %v150 = vpop.permute.xlu0 %149
    %153 = vset.pattern.permute.xlu0 5
    %154 = vperm.xlu0 %153, %v146
    %v155 = vpop.permute.xlu0 %154
    %v157 = vmul.f32 %v150, %v23
    %v158 = vmul.f32 %v155, %v39
    %v161 = vrot.slane %v158, 7
    %v162 = vsel %vm16, %v161, %v157
    %163 = vrot.lane.b32.xlu0 %v162, 54
    %v164 = vpop.permute.xlu0 %163
    %vm166 = vcmask 509360
    %167 = vst.msk [vmem:[#allocation3] sm:$0x3] %vm166, %v164
    %v168 = vld [vmem:[%s0 + $0x1] sm:$0x1]
    %v169 = vld [vmem:[%s0 + $0x5] sm:$0x1]
    %171 = vset.pattern.permute.xlu0 6
    %172 = vperm.xlu0 %171, %v168
    %v173 = vpop.permute.xlu0 %172
    %176 = vset.pattern.permute.xlu0 6
    %177 = vperm.xlu0 %176, %v169
    %v178 = vpop.permute.xlu0 %177
    %v180 = vmul.f32 %v173, %v23
    %v181 = vmul.f32 %v178, %v39
    %v184 = vrot.slane %v181, 7
    %v185 = vsel %vm16, %v184, %v180
    %186 = vrot.lane.b32.xlu0 %v185, 63
    %v187 = vpop.permute.xlu0 %186
    %vm189 = vcmask 583160
    %190 = vst.msk [vmem:[#allocation3] sm:$0x3] %vm189, %v187
    %v191 = vld [vmem:[%s0 + $0x1] sm:$0x1]
    %v192 = vld [vmem:[%s0 + $0x5] sm:$0x1]
    %194 = vset.pattern.permute.xlu0 7
    %195 = vperm.xlu0 %194, %v191
    %v196 = vpop.permute.xlu0 %195
    %199 = vset.pattern.permute.xlu0 7
    %200 = vperm.xlu0 %199, %v192
    %v201 = vpop.permute.xlu0 %200
    %v203 = vmul.f32 %v196, %v23
    %v204 = vmul.f32 %v201, %v39
    %v207 = vrot.slane %v204, 7
    %v208 = vsel %vm16, %v207, %v203
    %209 = vrot.lane.b32.xlu0 %v208, 72
    %v210 = vpop.permute.xlu0 %209
    %vm212 = vcmask 656960
    %213 = vst.msk [vmem:[#allocation3] sm:$0x3] %vm212, %v210
    %v214 = vld [vmem:[#allocation3] sm:$0x3]
    %vm215 = vcmask 656384
    %216 = vst.msk [vmem:[#allocation4] sm:$0x3] %vm215, %v214
    %v217 = vld [vmem:[%s0] sm:$0x1]
    %v218 = vld [vmem:[%s0 + $0x4] sm:$0x1]
    %220 = vset.pattern.permute.xlu0 0
    %221 = vperm.xlu0 %220, %v217
    %v222 = vpop.permute.xlu0 %221
    %225 = vset.pattern.permute.xlu0 0
    %226 = vperm.xlu0 %225, %v218
    %v227 = vpop.permute.xlu0 %226
    %v230 = vrot.slane %v214, 1
    %v233 = vmul.f32 %v222, %v214
    %v234 = vmul.f32 %v227, %v230
    %v238 = vunpack.c.l.s4 1983009808
    %v239 = vunpack.c.0.s8 %v238
    %v240 = vlaneseq
    %v241 = vshrl.u32 %v240, 7
    %v242 = vsub.s32 %v239, %v241
    %v243 = vrot.slane %v233, %v242
    %v245 = vunpack.c.l.s4 1983009808
    %v246 = vunpack.c.0.s8 %v245
    %v247 = vlaneseq
    %v248 = vshrl.u32 %v247, 7
    %v249 = vsub.s32 %v246, %v248
    %v250 = vrot.slane %v234, %v249
    %vm251 = vcmask 1044484
    %v252 = vsel %vm251, %v243, %v243
    %vm253 = vcmask 1046534
    %v254 = vsel %vm253, %v243, %v252
    %v255 = vrot.slane %v250, 7
    %v256 = vsel %vm16, %v255, %v254
    %vm257 = vcmask 1043459
    %v258 = vsel %vm257, %v255, %v256
    %vm259 = vcmask 1045509
    %v260 = vsel %vm259, %v255, %v258
    %vm261 = vcmask 1047559
    %v262 = vsel %vm261, %v255, %v260
    %263 = vrot.lane.b32.xlu0 %v262, 81
    %v264 = vpop.permute.xlu0 %263
    %v265 = vrot.slane %v264, 6
    %vm266 = vcmask 662528
    %v267 = vsel %vm266, %v265, %v264
    %vm269 = vcmask 1042056
    %vm270 = vcmask 273410
    %vm271 = vmor %vm270, %vm269
    %272 = vst.msk [vmem:[#allocation4] sm:$0xf] %vm271, %v267
    %v273 = vld [vmem:[%s0] sm:$0x1]
    %v274 = vld [vmem:[%s0 + $0x4] sm:$0x1]
    %276 = vset.pattern.permute.xlu0 1
    %277 = vperm.xlu0 %276, %v273
    %v278 = vpop.permute.xlu0 %277
    %281 = vset.pattern.permute.xlu0 1
    %282 = vperm.xlu0 %281, %v274
    %v283 = vpop.permute.xlu0 %282
    %v285 = vmul.f32 %v278, %v214
    %v286 = vmul.f32 %v283, %v230
    %v290 = vunpack.c.l.s4 1983009808
    %v291 = vunpack.c.0.s8 %v290
    %v292 = vlaneseq
    %v293 = vshrl.u32 %v292, 7
    %v294 = vsub.s32 %v291, %v293
    %v295 = vrot.slane %v285, %v294
    %v297 = vunpack.c.l.s4 1983009808
    %v298 = vunpack.c.0.s8 %v297
    %v299 = vlaneseq
    %v300 = vshrl.u32 %v299, 7
    %v301 = vsub.s32 %v298, %v300
    %v302 = vrot.slane %v286, %v301
    %v303 = vsel %vm251, %v295, %v295
    %v304 = vsel %vm253, %v295, %v303
    %v305 = vrot.slane %v302, 7
    %v306 = vsel %vm16, %v305, %v304
    %v307 = vsel %vm257, %v305, %v306
    %v308 = vsel %vm259, %v305, %v307
    %v309 = vsel %vm261, %v305, %v308
    %310 = vrot.lane.b32.xlu0 %v309, 34
    %v311 = vpop.permute.xlu0 %310
    %vm313 = vcmask 935184
    %314 = vst.msk [vmem:[#allocation4 + $0x2] sm:$0x3] %vm313, %v311
    %v315 = vld [vmem:[%s0] sm:$0x1]
    %v316 = vld [vmem:[%s0 + $0x4] sm:$0x1]
    %318 = vset.pattern.permute.xlu0 2
    %319 = vperm.xlu0 %318, %v315
    %v320 = vpop.permute.xlu0 %319
    %323 = vset.pattern.permute.xlu0 2
    %324 = vperm.xlu0 %323, %v316
    %v325 = vpop.permute.xlu0 %324
    %v327 = vmul.f32 %v320, %v214
    %v328 = vmul.f32 %v325, %v230
    %v332 = vunpack.c.l.s4 1983009808
    %v333 = vunpack.c.0.s8 %v332
    %v334 = vlaneseq
    %v335 = vshrl.u32 %v334, 7
    %v336 = vsub.s32 %v333, %v335
    %v337 = vrot.slane %v327, %v336
    %v339 = vunpack.c.l.s4 1983009808
    %v340 = vunpack.c.0.s8 %v339
    %v341 = vlaneseq
    %v342 = vshrl.u32 %v341, 7
    %v343 = vsub.s32 %v340, %v342
    %v344 = vrot.slane %v328, %v343
    %v345 = vsel %vm251, %v337, %v337
    %v346 = vsel %vm253, %v337, %v345
    %v347 = vrot.slane %v344, 7
    %v348 = vsel %vm16, %v347, %v346
    %v349 = vsel %vm257, %v347, %v348
    %v350 = vsel %vm259, %v347, %v349
    %v351 = vsel %vm261, %v347, %v350
    %352 = vrot.lane.b32.xlu0 %v351, 115
    %v353 = vpop.permute.xlu0 %352
    %v354 = vrot.slane %v353, 6
    %vm355 = vcmask 941056
    %v356 = vsel %vm355, %v354, %v353
    %vm358 = vcmask 1042328
    %vm359 = vcmask 551938
    %vm360 = vmor %vm359, %vm358
    %361 = vst.msk [vmem:[#allocation4 + $0x2] sm:$0xf] %vm360, %v356
    %v362 = vld [vmem:[%s0] sm:$0x1]
    %v363 = vld [vmem:[%s0 + $0x4] sm:$0x1]
    %365 = vset.pattern.permute.xlu0 3
    %366 = vperm.xlu0 %365, %v362
    %v367 = vpop.permute.xlu0 %366
    %370 = vset.pattern.permute.xlu0 3
    %371 = vperm.xlu0 %370, %v363
    %v372 = vpop.permute.xlu0 %371
    %v374 = vmul.f32 %v367, %v214
    %v375 = vmul.f32 %v372, %v230
    %v379 = vunpack.c.l.s4 1983009808
    %v380 = vunpack.c.0.s8 %v379
    %v381 = vlaneseq
    %v382 = vshrl.u32 %v381, 7
    %v383 = vsub.s32 %v380, %v382
    %v384 = vrot.slane %v374, %v383
    %v386 = vunpack.c.l.s4 1983009808
    %v387 = vunpack.c.0.s8 %v386
    %v388 = vlaneseq
    %v389 = vshrl.u32 %v388, 7
    %v390 = vsub.s32 %v387, %v389
    %v391 = vrot.slane %v375, %v390
    %v392 = vsel %vm251, %v384, %v384
    %v393 = vsel %vm253, %v384, %v392
    %v394 = vrot.slane %v391, 7
    %v395 = vsel %vm16, %v394, %v393
    %v396 = vsel %vm257, %v394, %v395
    %v397 = vsel %vm259, %v394, %v396
    %v398 = vsel %vm261, %v394, %v397
    %399 = vrot.lane.b32.xlu0 %v398, 68
    %v400 = vpop.permute.xlu0 %399
    %v401 = vrot.slane %v400, 6
    %vm402 = vcmask 556032
    %v403 = vsel %vm402, %v401, %v400
    %vm405 = vcmask 1041952
    %vm406 = vcmask 166914
    %vm407 = vmor %vm406, %vm405
    %408 = vst.msk [vmem:[#allocation4 + $0x4] sm:$0xf] %vm407, %v403
    %v409 = vld [vmem:[%s0] sm:$0x1]
    %v410 = vld [vmem:[%s0 + $0x4] sm:$0x1]
    %412 = vset.pattern.permute.xlu0 4
    %413 = vperm.xlu0 %412, %v409
    %v414 = vpop.permute.xlu0 %413
    %417 = vset.pattern.permute.xlu0 4
    %418 = vperm.xlu0 %417, %v410
    %v419 = vpop.permute.xlu0 %418
    %v421 = vmul.f32 %v414, %v214
    %v422 = vmul.f32 %v419, %v230
    %v426 = vunpack.c.l.s4 1983009808
    %v427 = vunpack.c.0.s8 %v426
    %v428 = vlaneseq
    %v429 = vshrl.u32 %v428, 7
    %v430 = vsub.s32 %v427, %v429
    %v431 = vrot.slane %v421, %v430
    %v433 = vunpack.c.l.s4 1983009808
    %v434 = vunpack.c.0.s8 %v433
    %v435 = vlaneseq
    %v436 = vshrl.u32 %v435, 7
    %v437 = vsub.s32 %v434, %v436
    %v438 = vrot.slane %v422, %v437
    %v439 = vsel %vm251, %v431, %v431
    %v440 = vsel %vm253, %v431, %v439
    %v441 = vrot.slane %v438, 7
    %v442 = vsel %vm16, %v441, %v440
    %v443 = vsel %vm257, %v441, %v442
    %v444 = vsel %vm259, %v441, %v443
    %v445 = vsel %vm261, %v441, %v444
    %446 = vrot.lane.b32.xlu0 %v445, 21
    %v447 = vpop.permute.xlu0 %446
    %vm449 = vcmask 828584
    %450 = vst.msk [vmem:[#allocation4 + $0x6] sm:$0x3] %vm449, %v447
    %v451 = vld [vmem:[%s0] sm:$0x1]
    %v452 = vld [vmem:[%s0 + $0x4] sm:$0x1]
    %454 = vset.pattern.permute.xlu0 5
    %455 = vperm.xlu0 %454, %v451
    %v456 = vpop.permute.xlu0 %455
    %459 = vset.pattern.permute.xlu0 5
    %460 = vperm.xlu0 %459, %v452
    %v461 = vpop.permute.xlu0 %460
    %v463 = vmul.f32 %v456, %v214
    %v464 = vmul.f32 %v461, %v230
    %v468 = vunpack.c.l.s4 1983009808
    %v469 = vunpack.c.0.s8 %v468
    %v470 = vlaneseq
    %v471 = vshrl.u32 %v470, 7
    %v472 = vsub.s32 %v469, %v471
    %v473 = vrot.slane %v463, %v472
    %v475 = vunpack.c.l.s4 1983009808
    %v476 = vunpack.c.0.s8 %v475
    %v477 = vlaneseq
    %v478 = vshrl.u32 %v477, 7
    %v479 = vsub.s32 %v476, %v478
    %v480 = vrot.slane %v464, %v479
    %v481 = vsel %vm251, %v473, %v473
    %v482 = vsel %vm253, %v473, %v481
    %v483 = vrot.slane %v480, 7
    %v484 = vsel %vm16, %v483, %v482
    %v485 = vsel %vm257, %v483, %v484
    %v486 = vsel %vm259, %v483, %v485
    %v487 = vsel %vm261, %v483, %v486
    %488 = vrot.lane.b32.xlu0 %v487, 102
    %v489 = vpop.permute.xlu0 %488
    %v490 = vrot.slane %v489, 6
    %vm491 = vcmask 834560
    %v492 = vsel %vm491, %v490, %v489
    %vm494 = vcmask 1042224
    %vm495 = vcmask 445442
    %vm496 = vmor %vm495, %vm494
    %497 = vst.msk [vmem:[#allocation4 + $0x6] sm:$0xf] %vm496, %v492
    %v498 = vld [vmem:[%s0] sm:$0x1]
    %v499 = vld [vmem:[%s0 + $0x4] sm:$0x1]
    %501 = vset.pattern.permute.xlu0 6
    %502 = vperm.xlu0 %501, %v498
    %v503 = vpop.permute.xlu0 %502
    %506 = vset.pattern.permute.xlu0 6
    %507 = vperm.xlu0 %506, %v499
    %v508 = vpop.permute.xlu0 %507
    %v510 = vmul.f32 %v503, %v214
    %v511 = vmul.f32 %v508, %v230
    %v515 = vunpack.c.l.s4 1983009808
    %v516 = vunpack.c.0.s8 %v515
    %v517 = vlaneseq
    %v518 = vshrl.u32 %v517, 7
    %v519 = vsub.s32 %v516, %v518
    %v520 = vrot.slane %v510, %v519
    %v522 = vunpack.c.l.s4 1983009808
    %v523 = vunpack.c.0.s8 %v522
    %v524 = vlaneseq
    %v525 = vshrl.u32 %v524, 7
    %v526 = vsub.s32 %v523, %v525
    %v527 = vrot.slane %v511, %v526
    %v528 = vsel %vm251, %v520, %v520
    %v529 = vsel %vm253, %v520, %v528
    %v530 = vrot.slane %v527, 7
    %v531 = vsel %vm16, %v530, %v529
    %v532 = vsel %vm257, %v530, %v531
    %v533 = vsel %vm259, %v530, %v532
    %v534 = vsel %vm261, %v530, %v533
    %535 = vrot.lane.b32.xlu0 %v534, 55
    %v536 = vpop.permute.xlu0 %535
    %v537 = vrot.slane %v536, 6
    %vm538 = vcmask 449536
    %v539 = vsel %vm538, %v537, %v536
    %vm541 = vcmask 1041848
    %vm542 = vcmask 60418
    %vm543 = vmor %vm542, %vm541
    %544 = vst.msk [vmem:[#allocation4 + $0x8] sm:$0xf] %vm543, %v539
    %v545 = vld [vmem:[%s0] sm:$0x1]
    %v546 = vld [vmem:[%s0 + $0x4] sm:$0x1]
    %548 = vset.pattern.permute.xlu0 7
    %549 = vperm.xlu0 %548, %v545
    %v550 = vpop.permute.xlu0 %549
    %553 = vset.pattern.permute.xlu0 7
    %554 = vperm.xlu0 %553, %v546
    %v555 = vpop.permute.xlu0 %554
    %v557 = vmul.f32 %v550, %v214
    %v558 = vmul.f32 %v555, %v230
    %v562 = vunpack.c.l.s4 1983009808
    %v563 = vunpack.c.0.s8 %v562
    %v564 = vlaneseq
    %v565 = vshrl.u32 %v564, 7
    %v566 = vsub.s32 %v563, %v565
    %v567 = vrot.slane %v557, %v566
    %v569 = vunpack.c.l.s4 1983009808
    %v570 = vunpack.c.0.s8 %v569
    %v571 = vlaneseq
    %v572 = vshrl.u32 %v571, 7
    %v573 = vsub.s32 %v570, %v572
    %v574 = vrot.slane %v558, %v573
    %v575 = vsel %vm251, %v567, %v567
    %v576 = vsel %vm253, %v567, %v575
    %v577 = vrot.slane %v574, 7
    %v578 = vsel %vm16, %v577, %v576
    %v579 = vsel %vm257, %v577, %v578
    %v580 = vsel %vm259, %v577, %v579
    %v581 = vsel %vm261, %v577, %v580
    %582 = vrot.lane.b32.xlu0 %v581, 8
    %v583 = vpop.permute.xlu0 %582
    %vm585 = vcmask 721984
    %586 = vst.msk [vmem:[#allocation4 + $0xa] sm:$0x3] %vm585, %v583
    // Predicated region
    $region6: #{tpu_custom_call.1} parent=1 // pred_check
      _
    $region7: #{tpu_custom_call.1} parent=1 // pred_check_branch
      %588 = sbr.rel (0) target = $region9
    $region8: #{tpu_custom_call.1} parent=1 // pred_region
      %s590 = ssub.s32 192, 192
      %591 = vsyncadd [#allocation5], %s590
      %s593 = sshll.u32 [#allocation4], 4
      %s594 = int_to_ptr.vmem [resolvable:$true] %s593
      %596 = dma.vmem_to_hbm [thread:$0]  %s594, 192, %s1, [#allocation5]
    $region9: #{tpu_custom_call.1} parent=1 // pred_fallthru
      _
    // Predicated region
    $region10: #{tpu_custom_call.1} parent=1 // pred_check
      _
    $region11: #{tpu_custom_call.1} parent=1 // pred_check_branch
      %598 = sbr.rel (0) target = $region13
    $region12: #{tpu_custom_call.1} parent=1 // pred_region
      %599 = dma.done [#allocation5], 192
    $region13: #{tpu_custom_call.1} parent=1 // pred_fallthru
      _
    %600 = vsyncpa [#allocation5], 1

</llo_original>
